<compile_context>
chip_gen: v7x
topology: tpu7x:2x2x1
jax: 0.10.0
libtpu: 0.0.40
codegen_flags: <defaults>
</compile_context>

<pallas_src>
import jax
import jax.numpy as jnp
import numpy as np
from jax.experimental import pallas as pl
from jax.experimental.pallas import tpu as pltpu


# ---------------------------------------------------------------------------
# Kernel
# ---------------------------------------------------------------------------
def _standardizer_kernel(x_ref, sum_ref, sumsq_ref, count_ref,
                         out_ref, nsum_ref, nsumsq_ref, mean_ref, std_ref):
    x = x_ref[...].astype(jnp.float32)                       # (B, TILE_D)

    # Batch (sublane) reductions for this feature tile -> XLU.
    new_sum = sum_ref[...] + jnp.sum(x, axis=0, keepdims=True)        # (1, TILE_D)
    new_sumsq = sumsq_ref[...] + jnp.sum(x * x, axis=0, keepdims=True)  # (1, TILE_D)

    # count_ref already holds the *updated* count (old count + B), SMEM scalar.
    inv_count = 1.0 / count_ref[0, 0]

    mean = new_sum * inv_count                               # (1, TILE_D)
    var = jnp.maximum(new_sumsq * inv_count - mean * mean, jnp.float32(0.01))
    std = jnp.sqrt(var)                                      # (1, TILE_D)
    inv_std = 1.0 / std                                      # row-only EUP work

    # Hoist the broadcasts once; hot path is pure VPU sub/mul on (B, TILE_D).
    mean_b = jnp.broadcast_to(mean, x.shape)
    inv_std_b = jnp.broadcast_to(inv_std, x.shape)
    out_ref[...] = ((x - mean_b) * inv_std_b).astype(out_ref.dtype)

    nsum_ref[...] = new_sum
    nsumsq_ref[...] = new_sumsq
    mean_ref[...] = mean
    std_ref[...] = std


# ---------------------------------------------------------------------------
# Tile sizing / compiler params (generation aware)
# ---------------------------------------------------------------------------
def _vmem_limit_bytes():
    """Scoped-VMEM request that is safe on v5e/v6e (128 MiB physical) and
    v7x (64 MiB physical)."""
    try:
        cap = int(pltpu.get_tpu_info().vmem_capacity_bytes)
    except Exception:
        cap = 64 << 20          # conservative fallback (v7x-sized)
    return min((cap * 3) // 4, 96 << 20)


def _pick_tile_d(B, D, itemsize, vmem_limit_bytes):
    """Largest lane-aligned (multiple-of-128) tile width that divides D and
    keeps the double-buffered x/out pipeline inside the VMEM budget."""
    if D % 128 != 0:
        return D                # small / unaligned case: one full-width tile
    budget = max(vmem_limit_bytes // 2, 1 << 20)       # headroom for state rows
    per_lane = 2 * 2 * B * max(itemsize, 4)            # 2 bufs x (x + out), f32
    cap = max(128, (budget // per_lane) // 128 * 128)
    best = 128
    t = 128
    while t <= min(D, cap):
        if D % t == 0:
            best = t
        t += 128
    return best


# ---------------------------------------------------------------------------
# Wrapper
# ---------------------------------------------------------------------------
def standardizer_forward(x, state_sum, state_sumsq, state_count, *, tile_d=None):
    """One forward pass. Returns (normalized_x, new_sum, new_sumsq, new_count,
    mean, std)."""
    B, D = x.shape
    state_sum = jnp.asarray(state_sum, jnp.float32).reshape(1, D)
    state_sumsq = jnp.asarray(state_sumsq, jnp.float32).reshape(1, D)
    # Scalar count update is a single add -> done here; kernel receives the
    # already-updated count (avoids a replicated SMEM-scalar output write).
    new_count = (jnp.asarray(state_count, jnp.float32) + jnp.float32(B)).reshape(1, 1)

    vmem_limit = _vmem_limit_bytes()
    if tile_d is None:
        tile_d = _pick_tile_d(B, D, x.dtype.itemsize, vmem_limit)
    assert D % tile_d == 0, "tile_d must divide D"
    grid = (D // tile_d,)

    row = lambda j: (0, j)
    out_shape = (
        jax.ShapeDtypeStruct((B, D), x.dtype),        # (x - mean) / std
        jax.ShapeDtypeStruct((1, D), jnp.float32),    # updated _sum
        jax.ShapeDtypeStruct((1, D), jnp.float32),    # updated _sumsq
        jax.ShapeDtypeStruct((1, D), jnp.float32),    # mean
        jax.ShapeDtypeStruct((1, D), jnp.float32),    # std
    )

    out, nsum, nsumsq, mean, std = pl.pallas_call(
        _standardizer_kernel,
        out_shape=out_shape,
        grid=grid,
        in_specs=[
            pl.BlockSpec((B, tile_d), row),                          # x tile
            pl.BlockSpec((1, tile_d), row),                          # _sum tile
            pl.BlockSpec((1, tile_d), row),                          # _sumsq tile
            pl.BlockSpec(memory_space=pltpu.MemorySpace.SMEM),       # count scalar
        ],
        out_specs=(
            pl.BlockSpec((B, tile_d), row),                          # out tile
            pl.BlockSpec((1, tile_d), row),                          # new _sum
            pl.BlockSpec((1, tile_d), row),                          # new _sumsq
            pl.BlockSpec((1, tile_d), row),                          # mean
            pl.BlockSpec((1, tile_d), row),                          # std
        ),
        # Running state updated in place: state_sum -> new_sum, state_sumsq -> new_sumsq.
        input_output_aliases={1: 1, 2: 2},
        compiler_params=pltpu.CompilerParams(
            dimension_semantics=("parallel",),
            vmem_limit_bytes=vmem_limit,
        ),
    )(x, state_sum, state_sumsq, new_count)

    return out, nsum, nsumsq, new_count, mean, std


# ---------------------------------------------------------------------------
# Pure numpy reference mirroring the PyTorch module
# ---------------------------------------------------------------------------
def standardizer_reference(x, s, ss, c):
    s = s + x.sum(axis=0).ravel()
    ss = ss + np.square(x).sum(axis=0).ravel()
    c = c + len(x)
    mean = s / c
    std = np.sqrt(np.maximum(ss / c - np.square(mean), 0.01))
    return (x - mean) / std, s, ss, c, mean, std


if __name__ == "__main__":
    B, D = 8, 256                       # small, lane-dense demo shape
    key = jax.random.PRNGKey(0)
    x = jax.random.normal(key, (B, D), dtype=jnp.float32)

    # Running-statistic state, matching the module's __init__ values
    # (scalars broadcast to the feature dimension on first update).
    state_sum = jnp.zeros((1, D), jnp.float32)                 # self._sum = 0.0
    state_sumsq = jnp.full((1, D), 0.01, jnp.float32)          # self._sumsq = 0.01
    state_count = jnp.float32(0.01)                            # self._count = 0.01

    # tile_d=128 -> grid of 2 feature tiles, exercising the pipelined path.
    out, nsum, nsumsq, ncount, mean, std = standardizer_forward(
        x, state_sum, state_sumsq, state_count, tile_d=128)
    jax.block_until_ready(out)

    # Correctness check vs numpy reference of the PyTorch module.
    ref_out, rs, rss, rc, rmean, rstd = standardizer_reference(
        np.asarray(x), np.zeros((D,), np.float32),
        np.full((D,), 0.01, np.float32), np.float32(0.01))
    assert np.allclose(np.asarray(out), ref_out, rtol=1e-5, atol=1e-5)
    assert np.allclose(np.asarray(nsum).ravel(), rs, rtol=1e-5, atol=1e-5)
    assert np.allclose(np.asarray(nsumsq).ravel(), rss, rtol=1e-5, atol=1e-5)
    assert np.allclose(float(np.asarray(ncount).ravel()[0]), rc, rtol=1e-5, atol=1e-5)
    assert np.allclose(np.asarray(mean).ravel(), rmean, rtol=1e-5, atol=1e-5)
    assert np.allclose(np.asarray(std).ravel(), rstd, rtol=1e-5, atol=1e-5)

    print("KERNEL_OK")
</pallas_src>

<mosaic_0001>
module attributes {stable_mosaic.version = 11 : i64} {
  func.func @_standardizer_kernel(%arg0: i32, %arg1: memref<8x128xf32, #tpu.memory_space<vmem>>, %arg2: memref<1x128xf32, #tpu.memory_space<vmem>>, %arg3: memref<1x128xf32, #tpu.memory_space<vmem>>, %arg4: memref<1x1xf32, #tpu.memory_space<smem>>, %arg5: memref<8x128xf32, #tpu.memory_space<vmem>>, %arg6: memref<1x128xf32, #tpu.memory_space<vmem>>, %arg7: memref<1x128xf32, #tpu.memory_space<vmem>>, %arg8: memref<1x128xf32, #tpu.memory_space<vmem>>, %arg9: memref<1x128xf32, #tpu.memory_space<vmem>>) attributes {dimension_semantics = [#tpu.dimension_semantics<parallel>], iteration_bounds = array<i64: 2>, scalar_prefetch = 0 : i64, scratch_operands = 0 : i64, tpu.core_type = #tpu.core_type<tc>, window_params = [{transform_indices = @transform_0, window_bounds = array<i64: 8, 128>}, {transform_indices = @transform_1, window_bounds = array<i64: 1, 128>}, {transform_indices = @transform_2, window_bounds = array<i64: 1, 128>}, {transform_indices = @transform_3, window_bounds = array<i64: 1, 1>}, {transform_indices = @transform_4, window_bounds = array<i64: 8, 128>}, {transform_indices = @transform_5, window_bounds = array<i64: 1, 128>}, {transform_indices = @transform_6, window_bounds = array<i64: 1, 128>}, {transform_indices = @transform_7, window_bounds = array<i64: 1, 128>}, {transform_indices = @transform_8, window_bounds = array<i64: 1, 128>}]} {
    %c0 = arith.constant 0 : index
    %c0_0 = arith.constant 0 : index
    %0 = vector.load %arg1[%c0, %c0_0] : memref<8x128xf32, #tpu.memory_space<vmem>>, vector<8x128xf32>
    %c0_1 = arith.constant 0 : index
    %c0_2 = arith.constant 0 : index
    %1 = vector.load %arg2[%c0_1, %c0_2] : memref<1x128xf32, #tpu.memory_space<vmem>>, vector<1x128xf32>
    %cst = arith.constant dense<0.000000e+00> : vector<128xf32>
    %2 = vector.multi_reduction <add>, %0, %cst [0] : vector<8x128xf32> to vector<128xf32>
    %3 = vector.shape_cast %2 : vector<128xf32> to vector<1x128xf32>
    %4 = arith.addf %1, %3 : vector<1x128xf32>
    %c0_3 = arith.constant 0 : index
    %c0_4 = arith.constant 0 : index
    %5 = vector.load %arg3[%c0_3, %c0_4] : memref<1x128xf32, #tpu.memory_space<vmem>>, vector<1x128xf32>
    %6 = arith.mulf %0, %0 : vector<8x128xf32>
    %cst_5 = arith.constant dense<0.000000e+00> : vector<128xf32>
    %7 = vector.multi_reduction <add>, %6, %cst_5 [0] : vector<8x128xf32> to vector<128xf32>
    %8 = vector.shape_cast %7 : vector<128xf32> to vector<1x128xf32>
    %9 = arith.addf %5, %8 : vector<1x128xf32>
    %c0_6 = arith.constant 0 : index
    %c0_7 = arith.constant 0 : index
    %10 = memref.load %arg4[%c0_6, %c0_7] : memref<1x1xf32, #tpu.memory_space<smem>>
    %cst_8 = arith.constant 1.000000e+00 : f32
    %11 = arith.divf %cst_8, %10 : f32
    %12 = vector.broadcast %11 : f32 to vector<1x128xf32>
    %13 = arith.mulf %4, %12 : vector<1x128xf32>
    %14 = vector.broadcast %11 : f32 to vector<1x128xf32>
    %15 = arith.mulf %9, %14 : vector<1x128xf32>
    %16 = arith.mulf %13, %13 : vector<1x128xf32>
    %17 = arith.subf %15, %16 : vector<1x128xf32>
    %cst_9 = arith.constant 0.00999999977 : f32
    %18 = vector.broadcast %cst_9 : f32 to vector<1x128xf32>
    %19 = arith.maximumf %17, %18 : vector<1x128xf32>
    %20 = math.sqrt %19 : vector<1x128xf32>
    %cst_10 = arith.constant 1.000000e+00 : f32
    %21 = vector.broadcast %cst_10 : f32 to vector<1x128xf32>
    %22 = arith.divf %21, %20 : vector<1x128xf32>
    %23 = vector.shape_cast %13 : vector<1x128xf32> to vector<1x128xf32>
    %24 = vector.broadcast %23 : vector<1x128xf32> to vector<8x128xf32>
    %25 = vector.shape_cast %22 : vector<1x128xf32> to vector<1x128xf32>
    %26 = vector.broadcast %25 : vector<1x128xf32> to vector<8x128xf32>
    %27 = arith.subf %0, %24 : vector<8x128xf32>
    %28 = arith.mulf %27, %26 : vector<8x128xf32>
    %c0_11 = arith.constant 0 : index
    %c0_12 = arith.constant 0 : index
    %29 = vector.load %arg5[%c0_11, %c0_12] : memref<8x128xf32, #tpu.memory_space<vmem>>, vector<8x128xf32>
    tpu.vector_store %arg5[%c0_11, %c0_12], %28 {strides = array<i32>} : memref<8x128xf32, #tpu.memory_space<vmem>>, vector<8x128xf32>,
    %c0_13 = arith.constant 0 : index
    %c0_14 = arith.constant 0 : index
    %30 = vector.load %arg6[%c0_13, %c0_14] : memref<1x128xf32, #tpu.memory_space<vmem>>, vector<1x128xf32>
    tpu.vector_store %arg6[%c0_13, %c0_14], %4 {strides = array<i32>} : memref<1x128xf32, #tpu.memory_space<vmem>>, vector<1x128xf32>,
    %c0_15 = arith.constant 0 : index
    %c0_16 = arith.constant 0 : index
    %31 = vector.load %arg7[%c0_15, %c0_16] : memref<1x128xf32, #tpu.memory_space<vmem>>, vector<1x128xf32>
    tpu.vector_store %arg7[%c0_15, %c0_16], %9 {strides = array<i32>} : memref<1x128xf32, #tpu.memory_space<vmem>>, vector<1x128xf32>,
    %c0_17 = arith.constant 0 : index
    %c0_18 = arith.constant 0 : index
    %32 = vector.load %arg8[%c0_17, %c0_18] : memref<1x128xf32, #tpu.memory_space<vmem>>, vector<1x128xf32>
    tpu.vector_store %arg8[%c0_17, %c0_18], %13 {strides = array<i32>} : memref<1x128xf32, #tpu.memory_space<vmem>>, vector<1x128xf32>,
    %c0_19 = arith.constant 0 : index
    %c0_20 = arith.constant 0 : index
    %33 = vector.load %arg9[%c0_19, %c0_20] : memref<1x128xf32, #tpu.memory_space<vmem>>, vector<1x128xf32>
    tpu.vector_store %arg9[%c0_19, %c0_20], %20 {strides = array<i32>} : memref<1x128xf32, #tpu.memory_space<vmem>>, vector<1x128xf32>,
    return
  }
  func.func @transform_0(%arg0: i32) -> (i32, i32) {
    %c0_i32 = arith.constant 0 : i32
    %c0_i32_0 = arith.constant 0 : i32
    return %c0_i32, %arg0 : i32, i32
  }
  func.func @transform_1(%arg0: i32) -> (i32, i32) {
    %c0_i32 = arith.constant 0 : i32
    %c0_i32_0 = arith.constant 0 : i32
    return %c0_i32, %arg0 : i32, i32
  }
  func.func @transform_2(%arg0: i32) -> (i32, i32) {
    %c0_i32 = arith.constant 0 : i32
    %c0_i32_0 = arith.constant 0 : i32
    return %c0_i32, %arg0 : i32, i32
  }
  func.func @transform_3(%arg0: i32) -> (i32, i32) {
    %c0_i32 = arith.constant 0 : i32
    %c0_i32_0 = arith.constant 0 : i32
    %c0_i32_1 = arith.constant 0 : i32
    return %c0_i32, %c0_i32_0 : i32, i32
  }
  func.func @transform_4(%arg0: i32) -> (i32, i32) {
    %c0_i32 = arith.constant 0 : i32
    %c0_i32_0 = arith.constant 0 : i32
    return %c0_i32, %arg0 : i32, i32
  }
  func.func @transform_5(%arg0: i32) -> (i32, i32) {
    %c0_i32 = arith.constant 0 : i32
    %c0_i32_0 = arith.constant 0 : i32
    return %c0_i32, %arg0 : i32, i32
  }
  func.func @transform_6(%arg0: i32) -> (i32, i32) {
    %c0_i32 = arith.constant 0 : i32
    %c0_i32_0 = arith.constant 0 : i32
    return %c0_i32, %arg0 : i32, i32
  }
  func.func @transform_7(%arg0: i32) -> (i32, i32) {
    %c0_i32 = arith.constant 0 : i32
    %c0_i32_0 = arith.constant 0 : i32
    return %c0_i32, %arg0 : i32, i32
  }
  func.func @transform_8(%arg0: i32) -> (i32, i32) {
    %c0_i32 = arith.constant 0 : i32
    %c0_i32_0 = arith.constant 0 : i32
    return %c0_i32, %arg0 : i32, i32
  }
}

</mosaic_0001>

<llo_original>
// kernel: tpu_custom_call.1
$region0: #{tpu_custom_call.1}
  #allocation0 [shape = 'u32[]', space=smem, size = 0x4, offset = 0x4, fixed_abs, tag = 'smem constant byte address 0x4 - core index']
  #allocation1 [shape = 'u32[144,128]{1,0:T(1,128)}', space=vmem, size = 0x12000, scoped, tag = 'internal scratch']
  #allocation2 [shape = 'f32[1,1]{1,0:T(1,128)S(6)}', space=smem, size = 0x200, scoped, tag = 'scoped memory for tpu_custom_call.1']
  %s0 = inlined_call_operand.vmem [shape: f32[8,256], index: 0, kind: input, shape index: {}]
  %s1 = inlined_call_operand.hbm [shape: f32[1,256], index: 1, kind: input, shape index: {}, may-alias: {1,5}]
  %s2 = inlined_call_operand.hbm [shape: f32[1,256], index: 2, kind: input, shape index: {}, may-alias: {2,6}]
  %s3 = inlined_call_operand.<no memory space> [shape: f32[1,1], index: 3, kind: input, shape index: {}]
  %s4 = inlined_call_operand.hbm [shape: f32[8,256], index: 4, kind: output, shape index: {0}]
  %s5 = inlined_call_operand.hbm [shape: f32[1,256], index: 5, kind: output, shape index: {1}, may-alias: {1,5}]
  %s6 = inlined_call_operand.hbm [shape: f32[1,256], index: 6, kind: output, shape index: {2}, may-alias: {2,6}]
  %s7 = inlined_call_operand.hbm [shape: f32[1,256], index: 7, kind: output, shape index: {3}]
  %s8 = inlined_call_operand.hbm [shape: f32[1,256], index: 8, kind: output, shape index: {4}]
  %9 = xla_tuple %s4, %s5, %s6, %s7, %s8
  %s10 = sld [smem:[#allocation0]]
  $region89: #{tpu_custom_call.1} parent=0
    _
  %s12 = ssub.s32 1, %s10
  %s13 = scalar_select 0, %s12, %s10
  %14 = sst [smem:[#allocation2]] %s3
  $region1: #{tpu_custom_call.1} parent=0
    #allocation3 [shape = 'u8[1024]{0}', space=vmem, size = 0x400, scoped, tag = 'input window, operand 1']
    #allocation4 [shape = 's32[2]{0}', space=sflag, size = 0x8, scoped, tag = 'scoped memory for tpu_custom_call.1']
    #allocation5 [shape = 's32[2]{0}', space=sflag, size = 0x8, scoped, tag = 'scoped memory for tpu_custom_call.1']
    #allocation6 [shape = 'u8[1024]{0}', space=vmem, size = 0x400, scoped, tag = 'input window, operand 2']
    #allocation7 [shape = 's32[2]{0}', space=sflag, size = 0x8, scoped, tag = 'scoped memory for tpu_custom_call.1']
    #allocation8 [shape = 'u8[8192]{0}', space=vmem, size = 0x2000, scoped, tag = 'output window, operand 0']
    #allocation9 [shape = 'u8[1024]{0}', space=vmem, size = 0x400, scoped, tag = 'output window, operand 1']
    #allocation10 [shape = 's32[2]{0}', space=sflag, size = 0x8, scoped, tag = 'scoped memory for tpu_custom_call.1']
    #allocation11 [shape = 'u8[1024]{0}', space=vmem, size = 0x400, scoped, tag = 'output window, operand 2']
    #allocation12 [shape = 'u8[1024]{0}', space=vmem, size = 0x400, scoped, tag = 'output window, operand 3']
    #allocation13 [shape = 's32[2]{0}', space=sflag, size = 0x8, scoped, tag = 'scoped memory for tpu_custom_call.1']
    #allocation14 [shape = 'u8[1024]{0}', space=vmem, size = 0x400, scoped, tag = 'output window, operand 4']
    %15 = vsyncpa [#allocation4], 0
    %s16 = scalar_lea.sflag [#allocation4], 1
    %17 = vsyncpa %s16, 0
    %18 = vsyncpa [#allocation7], 0
    %s19 = scalar_lea.sflag [#allocation7], 1
    %20 = vsyncpa %s19, 0
    %21 = vsyncpa [#allocation5], 0
    %s22 = scalar_lea.sflag [#allocation5], 1
    %23 = vsyncpa %s22, 0
    %24 = vsyncpa [#allocation10], 0
    %s25 = scalar_lea.sflag [#allocation10], 1
    %26 = vsyncpa %s25, 0
    %27 = vsyncpa [#allocation13], 0
    %s28 = scalar_lea.sflag [#allocation13], 1
    %29 = vsyncpa %s28, 0
    loop: start=0, step=1, limit=4
    $region2: #{tpu_custom_call.1} parent=1 // loop_pre_header
      _
    $region3: #{tpu_custom_call.1} parent=1 // loop_header
      %s31 = sphi 0, %s35
      %p32 = scmp.ge.s32.totalorder %s31, 4
      %s41 = sphi 0, %s43
      %s44 = sphi 0, %s41
      %s45 = sphi 0, %s44
      %s61 = sphi 0, %s45
      %s67 = sphi 0, %s69
      %s70 = sphi 0, %s67
      %s71 = sphi 0, %s70
      %s87 = sphi 0, %s71
      %s93 = sphi 0, %s95
      %s96 = sphi 0, %s93
      %s97 = sphi 0, %s96
      %s113 = sphi 0, %s97
      %s117 = sphi 0, %s117
      %s119 = sphi 0, %s117
      %s120 = sphi 0, %s119
      %s134 = sphi 0, %s120
      %s140 = sphi 0, %s142
      %s143 = sphi 0, %s140
      %s144 = sphi 0, %s143
      %s160 = sphi 0, %s144
      %s166 = sphi 0, %s168
      %s169 = sphi 0, %s166
      %s170 = sphi 0, %s169
      %s186 = sphi 0, %s170
      %s192 = sphi 0, %s194
      %s195 = sphi 0, %s192
      %s196 = sphi 0, %s195
      %s212 = sphi 0, %s196
      %s218 = sphi 0, %s220
      %s221 = sphi 0, %s218
      %s222 = sphi 0, %s221
      %s238 = sphi 0, %s222
      %s244 = sphi 0, %s246
      %s247 = sphi 0, %s244
      %s248 = sphi 0, %s247
      %s264 = sphi 0, %s248
    $region4: #{tpu_custom_call.1} parent=1 // loop_header_branch
      %34 = sbr.rel (%p32) target = $region8
    $region5: #{tpu_custom_call.1} parent=1 // loop_body
      %s36 = ssub.s32 %s31, 1
      %s37 = ssub.s32 %s31, 2
      %s38 = sadd.s32 %s31, 1
      %s39 = ssub.s32 %s31, %s38
      %p40 = scmp.eq.s32.totalorder %s39, 0
      %s42 = sadd.s32 %s41, 1
      %s43 = scalar_select %p40, %s41, %s42
      %p46 = pneg %p40
      %p47 = scmp.eq.s32.totalorder %s31, 1
      %p48 = por %p46, %p47
      %p49 = scmp.ne.s32.totalorder %s41, %s44
      %p50 = scmp.eq.s32.totalorder %s31, 0
      %p51 = por %p49, %p50
      %p52 = scmp.ne.s32.totalorder %s41, %s44
      %p53 = scmp.eq.s32.totalorder %s36, 1
      %p54 = por %p52, %p53
      %p55 = scmp.ne.s32.totalorder %s44, %s45
      %p56 = scmp.eq.s32.totalorder %s36, 0
      %p57 = por %p55, %p56
      %p58 = scmp.ne.s32.totalorder %s44, %s45
      %p59 = scmp.eq.s32.totalorder %s37, 1
      %p60 = por %p58, %p59
      %p62 = scmp.ne.s32.totalorder %s45, %s61
      %p63 = scmp.eq.s32.totalorder %s37, 0
      %p64 = por %p62, %p63
      %s65 = ssub.s32 %s31, %s38
      %p66 = scmp.eq.s32.totalorder %s65, 0
      %s68 = sadd.s32 %s67, 1
      %s69 = scalar_select %p66, %s67, %s68
      %p72 = pneg %p66
      %p73 = scmp.eq.s32.totalorder %s31, 1
      %p74 = por %p72, %p73
      %p75 = scmp.ne.s32.totalorder %s67, %s70
      %p76 = scmp.eq.s32.totalorder %s31, 0
      %p77 = por %p75, %p76
      %p78 = scmp.ne.s32.totalorder %s67, %s70
      %p79 = scmp.eq.s32.totalorder %s36, 1
      %p80 = por %p78, %p79
      %p81 = scmp.ne.s32.totalorder %s70, %s71
      %p82 = scmp.eq.s32.totalorder %s36, 0
      %p83 = por %p81, %p82
      %p84 = scmp.ne.s32.totalorder %s70, %s71
      %p85 = scmp.eq.s32.totalorder %s37, 1
      %p86 = por %p84, %p85
      %p88 = scmp.ne.s32.totalorder %s71, %s87
      %p89 = scmp.eq.s32.totalorder %s37, 0
      %p90 = por %p88, %p89
      %s91 = ssub.s32 %s31, %s38
      %p92 = scmp.eq.s32.totalorder %s91, 0
      %s94 = sadd.s32 %s93, 1
      %s95 = scalar_select %p92, %s93, %s94
      %p98 = pneg %p92
      %p99 = scmp.eq.s32.totalorder %s31, 1
      %p100 = por %p98, %p99
      %p101 = scmp.ne.s32.totalorder %s93, %s96
      %p102 = scmp.eq.s32.totalorder %s31, 0
      %p103 = por %p101, %p102
      %p104 = scmp.ne.s32.totalorder %s93, %s96
      %p105 = scmp.eq.s32.totalorder %s36, 1
      %p106 = por %p104, %p105
      %p107 = scmp.ne.s32.totalorder %s96, %s97
      %p108 = scmp.eq.s32.totalorder %s36, 0
      %p109 = por %p107, %p108
      %p110 = scmp.ne.s32.totalorder %s96, %s97
      %p111 = scmp.eq.s32.totalorder %s37, 1
      %p112 = por %p110, %p111
      %p114 = scmp.ne.s32.totalorder %s97, %s113
      %p115 = scmp.eq.s32.totalorder %s37, 0
      %p116 = por %p114, %p115
      %s118 = sadd.s32 %s117, 1
      %p121 = scmp.eq.s32.totalorder %s31, 1
      %p122 = scmp.ne.s32.totalorder %s117, %s119
      %p123 = scmp.eq.s32.totalorder %s31, 0
      %p124 = por %p122, %p123
      %p125 = scmp.ne.s32.totalorder %s117, %s119
      %p126 = scmp.eq.s32.totalorder %s36, 1
      %p127 = por %p125, %p126
      %p128 = scmp.ne.s32.totalorder %s119, %s120
      %p129 = scmp.eq.s32.totalorder %s36, 0
      %p130 = por %p128, %p129
      %p131 = scmp.ne.s32.totalorder %s119, %s120
      %p132 = scmp.eq.s32.totalorder %s37, 1
      %p133 = por %p131, %p132
      %p135 = scmp.ne.s32.totalorder %s120, %s134
      %p136 = scmp.eq.s32.totalorder %s37, 0
      %p137 = por %p135, %p136
      %s138 = ssub.s32 %s31, %s38
      %p139 = scmp.eq.s32.totalorder %s138, 0
      %s141 = sadd.s32 %s140, 1
      %s142 = scalar_select %p139, %s140, %s141
      %p145 = pneg %p139
      %p146 = scmp.eq.s32.totalorder %s31, 1
      %p147 = por %p145, %p146
      %p148 = scmp.ne.s32.totalorder %s140, %s143
      %p149 = scmp.eq.s32.totalorder %s31, 0
      %p150 = por %p148, %p149
      %p151 = scmp.ne.s32.totalorder %s140, %s143
      %p152 = scmp.eq.s32.totalorder %s36, 1
      %p153 = por %p151, %p152
      %p154 = scmp.ne.s32.totalorder %s143, %s144
      %p155 = scmp.eq.s32.totalorder %s36, 0
      %p156 = por %p154, %p155
      %p157 = scmp.ne.s32.totalorder %s143, %s144
      %p158 = scmp.eq.s32.totalorder %s37, 1
      %p159 = por %p157, %p158
      %p161 = scmp.ne.s32.totalorder %s144, %s160
      %p162 = scmp.eq.s32.totalorder %s37, 0
      %p163 = por %p161, %p162
      %s164 = ssub.s32 %s31, %s38
      %p165 = scmp.eq.s32.totalorder %s164, 0
      %s167 = sadd.s32 %s166, 1
      %s168 = scalar_select %p165, %s166, %s167
      %p171 = pneg %p165
      %p172 = scmp.eq.s32.totalorder %s31, 1
      %p173 = por %p171, %p172
      %p174 = scmp.ne.s32.totalorder %s166, %s169
      %p175 = scmp.eq.s32.totalorder %s31, 0
      %p176 = por %p174, %p175
      %p177 = scmp.ne.s32.totalorder %s166, %s169
      %p178 = scmp.eq.s32.totalorder %s36, 1
      %p179 = por %p177, %p178
      %p180 = scmp.ne.s32.totalorder %s169, %s170
      %p181 = scmp.eq.s32.totalorder %s36, 0
      %p182 = por %p180, %p181
      %p183 = scmp.ne.s32.totalorder %s169, %s170
      %p184 = scmp.eq.s32.totalorder %s37, 1
      %p185 = por %p183, %p184
      %p187 = scmp.ne.s32.totalorder %s170, %s186
      %p188 = scmp.eq.s32.totalorder %s37, 0
      %p189 = por %p187, %p188
      %s190 = ssub.s32 %s31, %s38
      %p191 = scmp.eq.s32.totalorder %s190, 0
      %s193 = sadd.s32 %s192, 1
      %s194 = scalar_select %p191, %s192, %s193
      %p197 = pneg %p191
      %p198 = scmp.eq.s32.totalorder %s31, 1
      %p199 = por %p197, %p198
      %p200 = scmp.ne.s32.totalorder %s192, %s195
      %p201 = scmp.eq.s32.totalorder %s31, 0
      %p202 = por %p200, %p201
      %p203 = scmp.ne.s32.totalorder %s192, %s195
      %p204 = scmp.eq.s32.totalorder %s36, 1
      %p205 = por %p203, %p204
      %p206 = scmp.ne.s32.totalorder %s195, %s196
      %p207 = scmp.eq.s32.totalorder %s36, 0
      %p208 = por %p206, %p207
      %p209 = scmp.ne.s32.totalorder %s195, %s196
      %p210 = scmp.eq.s32.totalorder %s37, 1
      %p211 = por %p209, %p210
      %p213 = scmp.ne.s32.totalorder %s196, %s212
      %p214 = scmp.eq.s32.totalorder %s37, 0
      %p215 = por %p213, %p214
      %s216 = ssub.s32 %s31, %s38
      %p217 = scmp.eq.s32.totalorder %s216, 0
      %s219 = sadd.s32 %s218, 1
      %s220 = scalar_select %p217, %s218, %s219
      %p223 = pneg %p217
      %p224 = scmp.eq.s32.totalorder %s31, 1
      %p225 = por %p223, %p224
      %p226 = scmp.ne.s32.totalorder %s218, %s221
      %p227 = scmp.eq.s32.totalorder %s31, 0
      %p228 = por %p226, %p227
      %p229 = scmp.ne.s32.totalorder %s218, %s221
      %p230 = scmp.eq.s32.totalorder %s36, 1
      %p231 = por %p229, %p230
      %p232 = scmp.ne.s32.totalorder %s221, %s222
      %p233 = scmp.eq.s32.totalorder %s36, 0
      %p234 = por %p232, %p233
      %p235 = scmp.ne.s32.totalorder %s221, %s222
      %p236 = scmp.eq.s32.totalorder %s37, 1
      %p237 = por %p235, %p236
      %p239 = scmp.ne.s32.totalorder %s222, %s238
      %p240 = scmp.eq.s32.totalorder %s37, 0
      %p241 = por %p239, %p240
      %s242 = ssub.s32 %s31, %s38
      %p243 = scmp.eq.s32.totalorder %s242, 0
      %s245 = sadd.s32 %s244, 1
      %s246 = scalar_select %p243, %s244, %s245
      %p249 = pneg %p243
      %p250 = scmp.eq.s32.totalorder %s31, 1
      %p251 = por %p249, %p250
      %p252 = scmp.ne.s32.totalorder %s244, %s247
      %p253 = scmp.eq.s32.totalorder %s31, 0
      %p254 = por %p252, %p253
      %p255 = scmp.ne.s32.totalorder %s244, %s247
      %p256 = scmp.eq.s32.totalorder %s36, 1
      %p257 = por %p255, %p256
      %p258 = scmp.ne.s32.totalorder %s247, %s248
      %p259 = scmp.eq.s32.totalorder %s36, 0
      %p260 = por %p258, %p259
      %p261 = scmp.ne.s32.totalorder %s247, %s248
      %p262 = scmp.eq.s32.totalorder %s37, 1
      %p263 = por %p261, %p262
      %p265 = scmp.ne.s32.totalorder %s248, %s264
      %p266 = scmp.eq.s32.totalorder %s37, 0
      %p267 = por %p265, %p266
      %p268 = scmp.le.s32.totalorder 1, %s31
      %p269 = scmp.lt.s32.totalorder %s31, 3
      %p270 = pnand %p268, %p269
      %p271 = pneg %p270
      // Predicated region
      $region9: #{tpu_custom_call.1} parent=5 // pred_check
        _
      $region10: #{tpu_custom_call.1} parent=5 // pred_check_branch
        %273 = sbr.rel (%p270) target = $region12
      $region11: #{tpu_custom_call.1} parent=5 // pred_region
        %s274 = ssub.s32 %s31, 1
        // Predicated region
        $region13: #{tpu_custom_call.1} parent=11 // pred_check
          %p275 = pneg %p130
        $region14: #{tpu_custom_call.1} parent=11 // pred_check_branch
          %277 = sbr.rel (%p275) target = $region16
        $region15: #{tpu_custom_call.1} parent=11 // pred_region
          _
        $region16: #{tpu_custom_call.1} parent=11 // pred_fallthru
          _
      $region12: #{tpu_custom_call.1} parent=5 // pred_fallthru
        _
      %p278 = scmp.lt.s32.totalorder %s31, 2
      // Predicated region
      $region17: #{tpu_custom_call.1} parent=5 // pred_check
        %p279 = pneg %p278
      $region18: #{tpu_custom_call.1} parent=5 // pred_check_branch
        %281 = sbr.rel (%p279) target = $region20
      $region19: #{tpu_custom_call.1} parent=5 // pred_region
        // Predicated region
        $region21: #{tpu_custom_call.1} parent=19 // pred_check
          %p282 = pneg %p51
        $region22: #{tpu_custom_call.1} parent=19 // pred_check_branch
          %284 = sbr.rel (%p282) target = $region24
        $region23: #{tpu_custom_call.1} parent=19 // pred_region
          %p285 = scmp.lt.s32.totalorder %s31, 1
          %s286 = scalar_select %p285, %s31, 1
          %s287 = smul.addr %s286, 8
          %s288 = scalar_lea.vmem %s0, %s287
        $region24: #{tpu_custom_call.1} parent=19 // pred_fallthru
          _
        // Predicated region
        $region25: #{tpu_custom_call.1} parent=19 // pred_check
          %p289 = pneg %p77
        $region26: #{tpu_custom_call.1} parent=19 // pred_check_branch
          %291 = sbr.rel (%p289) target = $region28
        $region27: #{tpu_custom_call.1} parent=19 // pred_region
          %s292 = sand.u32 %s67, 1
          %s293 = scalar_lea.sflag [#allocation4], %s292
          %s294 = sand.u32 %s67, 1
          %s295 = scalar_lea.vmem [#allocation3], %s294
          %s297 = ssub.s32 16, 16
          %298 = vsyncadd %s293, %s297
          %s299 = smul.addr %s31, 16
          %s300 = scalar_lea.hbm %s1, %s299
          %s302 = sshll.u32 %s295, 4
          %s303 = int_to_ptr.vmem [resolvable:$true] %s302
          %305 = dma.hbm_to_vmem [thread:$0]  %s300, 16, %s303, %s293
        $region28: #{tpu_custom_call.1} parent=19 // pred_fallthru
          _
        // Predicated region
        $region29: #{tpu_custom_call.1} parent=19 // pred_check
          %p306 = pneg %p103
        $region30: #{tpu_custom_call.1} parent=19 // pred_check_branch
          %308 = sbr.rel (%p306) target = $region32
        $region31: #{tpu_custom_call.1} parent=19 // pred_region
          %s309 = sand.u32 %s93, 1
          %s310 = scalar_lea.sflag [#allocation7], %s309
          %s311 = sand.u32 %s93, 1
          %s312 = scalar_lea.vmem [#allocation6], %s311
          %s314 = ssub.s32 16, 16
          %315 = vsyncadd %s310, %s314
          %s316 = smul.addr %s31, 16
          %s317 = scalar_lea.hbm %s2, %s316
          %s319 = sshll.u32 %s312, 4
          %s320 = int_to_ptr.vmem [resolvable:$true] %s319
          %322 = dma.hbm_to_vmem [thread:$0]  %s317, 16, %s320, %s310
        $region32: #{tpu_custom_call.1} parent=19 // pred_fallthru
          _
      $region20: #{tpu_custom_call.1} parent=5 // pred_fallthru
        _
      %p323 = scmp.le.s32.totalorder 1, %s31
      %p324 = scmp.lt.s32.totalorder %s31, 3
      %p325 = pnand %p323, %p324
      %p326 = pneg %p325
      // Predicated region
      $region33: #{tpu_custom_call.1} parent=5 // pred_check
        _
      $region34: #{tpu_custom_call.1} parent=5 // pred_check_branch
        %328 = sbr.rel (%p325) target = $region36
      $region35: #{tpu_custom_call.1} parent=5 // pred_region
        %s329 = ssub.s32 %s31, 1
        %s330 = sand.u32 %s70, 1
        %s331 = scalar_lea.sflag [#allocation4], %s330
        %s332 = sand.u32 %s70, 1
        %s333 = scalar_lea.vmem [#allocation3], %s332
        // Predicated region
        $region37: #{tpu_custom_call.1} parent=35 // pred_check
          %p334 = pneg %p83
        $region38: #{tpu_custom_call.1} parent=35 // pred_check_branch
          %336 = sbr.rel (%p334) target = $region40
        $region39: #{tpu_custom_call.1} parent=35 // pred_region
          %337 = dma.done %s331, 16
        $region40: #{tpu_custom_call.1} parent=35 // pred_fallthru
          _
        %s338 = sand.u32 %s96, 1
        %s339 = scalar_lea.sflag [#allocation7], %s338
        %s340 = sand.u32 %s96, 1
        %s341 = scalar_lea.vmem [#allocation6], %s340
        // Predicated region
        $region41: #{tpu_custom_call.1} parent=35 // pred_check
          %p342 = pneg %p109
        $region42: #{tpu_custom_call.1} parent=35 // pred_check_branch
          %344 = sbr.rel (%p342) target = $region44
        $region43: #{tpu_custom_call.1} parent=35 // pred_region
          %345 = dma.done %s339, 16
        $region44: #{tpu_custom_call.1} parent=35 // pred_fallthru
          _
        %p346 = scmp.lt.s32.totalorder %s36, 1
        %s347 = scalar_select %p346, %s36, 1
        %s348 = smul.addr %s347, 8
        %s349 = scalar_lea.vmem %s0, %s348
        %p350 = pneg %p57
        %p351 = pneg %p54
        %s352 = sand.u32 %s70, 1
        %s353 = scalar_lea.sflag [#allocation4], %s352
        %s354 = sand.u32 %s70, 1
        %s355 = scalar_lea.vmem [#allocation3], %s354
        %p356 = pneg %p83
        %p357 = pneg %p80
        %s358 = sand.u32 %s96, 1
        %s359 = scalar_lea.sflag [#allocation7], %s358
        %s360 = sand.u32 %s96, 1
        %s361 = scalar_lea.vmem [#allocation6], %s360
        %p362 = pneg %p109
        %p363 = pneg %p106
        %p364 = pneg %p130
        %p365 = pneg %p127
        %p366 = pneg %p156
        %p367 = pneg %p153
        %s368 = sand.u32 %s143, 1
        %s369 = scalar_lea.sflag [#allocation5], %s368
        %s370 = sand.u32 %s143, 1
        %s371 = smul.addr %s370, 8
        %s372 = scalar_lea.vmem [#allocation8], %s371
        %p373 = pneg %p182
        %p374 = pneg %p179
        %s375 = sand.u32 %s36, 1
        %s376 = scalar_lea.sflag [#allocation10], %s375
        %s377 = sand.u32 %s169, 1
        %s378 = scalar_lea.vmem [#allocation9], %s377
        %p379 = pneg %p208
        %p380 = pneg %p205
        %s381 = sand.u32 %s36, 1
        %s382 = scalar_lea.sflag [#allocation10], %s381
        %s383 = sand.u32 %s195, 1
        %s384 = scalar_lea.vmem [#allocation11], %s383
        %p385 = pneg %p234
        %p386 = pneg %p231
        %s387 = sand.u32 %s36, 1
        %s388 = scalar_lea.sflag [#allocation13], %s387
        %s389 = sand.u32 %s221, 1
        %s390 = scalar_lea.vmem [#allocation12], %s389
        %p391 = pneg %p260
        %p392 = pneg %p257
        %s393 = sand.u32 %s36, 1
        %s394 = scalar_lea.sflag [#allocation13], %s393
        %s395 = sand.u32 %s247, 1
        %s396 = scalar_lea.vmem [#allocation14], %s395
        %p397 = scmp.lt.s32.totalorder %s36, 1
        %s398 = scalar_select %p397, %s36, 1
        %s399 = smul.addr %s398, 8
        %s400 = scalar_lea.vmem %s0, %s399
        %v401 = vld [vmem:[%s400] sm:$0xff]
        %v402 = vld [vmem:[%s333] sm:$0x1]
        %v403 = vrot.slane %v401, 4
        %v404 = vadd.f32 %v401, %v403
        %v405 = vrot.slane %v404, 2
        %v406 = vadd.f32 %v404, %v405
        %v407 = vrot.slane %v406, 1
        %v408 = vadd.f32 %v406, %v407
        %v409 = vadd.f32 %v402, %v408
        %v410 = vld [vmem:[%s341] sm:$0x1]
        %v411 = vmul.f32 %v401, %v401
        %v412 = vrot.slane %v411, 4
        %v413 = vadd.f32 %v411, %v412
        %v414 = vrot.slane %v413, 2
        %v415 = vadd.f32 %v413, %v414
        %v416 = vrot.slane %v415, 1
        %v417 = vadd.f32 %v415, %v416
        %v418 = vadd.f32 %v410, %v417
        %s419 = sld [smem:[#allocation2]]
        %v420 = vstv %s419
        %v421 = vrcp.pop %v420
        %s422 = vtos %v421
        %v423 = vstv %s422
        %v424 = vmul.f32 %v409, %v423
        %v425 = vmul.f32 %v418, %v423
        %v426 = vmul.f32 %v424, %v424
        %v427 = vsub.f32 %v425, %v426
        %v428 = vmax.f32 %v427, 0.01
        %v429 = vrsqrt.pop %v428
        %v430 = vmul.f32 %v428, %v429
        %vm431 = vcmp.eq.f32.partialorder %v428, inf
        %v432 = vsel %vm431, %v428, %v430
        %vm433 = vcmp.eq.f32.partialorder %v428, 0.0
        %v434 = vand.u32 %v428, 2147483648
        %v435 = vsel %vm433, %v434, %v432
        %v436 = vrcp.pop %v435
        %v437 = vmul.f32 1.0, %v436
        %v439 = vlaneseq
        %v440 = vshrl.u32 %v439, 7
        %v441 = vsub.s32 0, %v440
        %v442 = vrot.slane %v424, %v441
        %v445 = vlaneseq
        %v446 = vshrl.u32 %v445, 7
        %v447 = vsub.s32 0, %v446
        %v448 = vrot.slane %v437, %v447
        %v450 = vsub.f32 %v401, %v442
        %v451 = vmul.f32 %v450, %v448
        %452 = vst [vmem:[%s372] sm:$0xff] %v451
        %453 = vst [vmem:[%s378] sm:$0x1] %v409
        %454 = vst [vmem:[%s384] sm:$0x1] %v418
        %455 = vst [vmem:[%s390] sm:$0x1] %v424
        %456 = vst [vmem:[%s396] sm:$0x1] %v435
        %s457 = sand.u32 %s143, 1
        %s458 = scalar_lea.sflag [#allocation5], %s457
        %s459 = sand.u32 %s143, 1
        %s460 = smul.addr %s459, 8
        %s461 = scalar_lea.vmem [#allocation8], %s460
        %s462 = sand.u32 %s36, 1
        %s463 = scalar_lea.sflag [#allocation10], %s462
        %s464 = sand.u32 %s169, 1
        %s465 = scalar_lea.vmem [#allocation9], %s464
        %s466 = sand.u32 %s36, 1
        %s467 = scalar_lea.sflag [#allocation10], %s466
        %s468 = sand.u32 %s195, 1
        %s469 = scalar_lea.vmem [#allocation11], %s468
        %s470 = sand.u32 %s36, 1
        %s471 = scalar_lea.sflag [#allocation13], %s470
        %s472 = sand.u32 %s221, 1
        %s473 = scalar_lea.vmem [#allocation12], %s472
        %s474 = sand.u32 %s36, 1
        %s475 = scalar_lea.sflag [#allocation13], %s474
        %s476 = sand.u32 %s247, 1
        %s477 = scalar_lea.vmem [#allocation14], %s476
        // Predicated region
        $region45: #{tpu_custom_call.1} parent=35 // pred_check
          %p478 = pneg %p153
        $region46: #{tpu_custom_call.1} parent=35 // pred_check_branch
          %480 = sbr.rel (%p478) target = $region48
        $region47: #{tpu_custom_call.1} parent=35 // pred_region
          %s482 = ssub.s32 128, 128
          %483 = vsyncadd %s458, %s482
          %s484 = smul.addr %s36, 128
          %s485 = scalar_lea.hbm %s4, %s484
          %s487 = sshll.u32 %s461, 4
          %s488 = int_to_ptr.vmem [resolvable:$true] %s487
          %490 = dma.vmem_to_hbm [thread:$0]  %s488, 128, %s485, %s458
        $region48: #{tpu_custom_call.1} parent=35 // pred_fallthru
          _
        // Predicated region
        $region49: #{tpu_custom_call.1} parent=35 // pred_check
          %p491 = pneg %p179
        $region50: #{tpu_custom_call.1} parent=35 // pred_check_branch
          %493 = sbr.rel (%p491) target = $region52
        $region51: #{tpu_custom_call.1} parent=35 // pred_region
          %s495 = ssub.s32 16, 16
          %496 = vsyncadd %s463, %s495
          %s497 = smul.addr %s36, 16
          %s498 = scalar_lea.hbm %s5, %s497
          %s500 = sshll.u32 %s465, 4
          %s501 = int_to_ptr.vmem [resolvable:$true] %s500
          %503 = dma.vmem_to_hbm [thread:$0]  %s501, 16, %s498, %s463
        $region52: #{tpu_custom_call.1} parent=35 // pred_fallthru
          _
        // Predicated region
        $region53: #{tpu_custom_call.1} parent=35 // pred_check
          %p504 = pneg %p205
        $region54: #{tpu_custom_call.1} parent=35 // pred_check_branch
          %506 = sbr.rel (%p504) target = $region56
        $region55: #{tpu_custom_call.1} parent=35 // pred_region
          %s508 = ssub.s32 16, 16
          %509 = vsyncadd %s467, %s508
          %s510 = smul.addr %s36, 16
          %s511 = scalar_lea.hbm %s6, %s510
          %s513 = sshll.u32 %s469, 4
          %s514 = int_to_ptr.vmem [resolvable:$true] %s513
          %516 = dma.vmem_to_hbm [thread:$0]  %s514, 16, %s511, %s467
        $region56: #{tpu_custom_call.1} parent=35 // pred_fallthru
          _
        // Predicated region
        $region57: #{tpu_custom_call.1} parent=35 // pred_check
          %p517 = pneg %p231
        $region58: #{tpu_custom_call.1} parent=35 // pred_check_branch
          %519 = sbr.rel (%p517) target = $region60
        $region59: #{tpu_custom_call.1} parent=35 // pred_region
          %s521 = ssub.s32 16, 16
          %522 = vsyncadd %s471, %s521
          %s523 = smul.addr %s36, 16
          %s524 = scalar_lea.hbm %s7, %s523
          %s526 = sshll.u32 %s473, 4
          %s527 = int_to_ptr.vmem [resolvable:$true] %s526
          %529 = dma.vmem_to_hbm [thread:$0]  %s527, 16, %s524, %s471
        $region60: #{tpu_custom_call.1} parent=35 // pred_fallthru
          _
        // Predicated region
        $region61: #{tpu_custom_call.1} parent=35 // pred_check
          %p530 = pneg %p257
        $region62: #{tpu_custom_call.1} parent=35 // pred_check_branch
          %532 = sbr.rel (%p530) target = $region64
        $region63: #{tpu_custom_call.1} parent=35 // pred_region
          %s534 = ssub.s32 16, 16
          %535 = vsyncadd %s475, %s534
          %s536 = smul.addr %s36, 16
          %s537 = scalar_lea.hbm %s8, %s536
          %s539 = sshll.u32 %s477, 4
          %s540 = int_to_ptr.vmem [resolvable:$true] %s539
          %542 = dma.vmem_to_hbm [thread:$0]  %s540, 16, %s537, %s475
        $region64: #{tpu_custom_call.1} parent=35 // pred_fallthru
          _
      $region36: #{tpu_custom_call.1} parent=5 // pred_fallthru
        _
      %p543 = scmp.le.s32.totalorder 2, %s31
      // Predicated region
      $region65: #{tpu_custom_call.1} parent=5 // pred_check
        %p544 = pneg %p543
      $region66: #{tpu_custom_call.1} parent=5 // pred_check_branch
        %546 = sbr.rel (%p544) target = $region68
      $region67: #{tpu_custom_call.1} parent=5 // pred_region
        %s547 = ssub.s32 %s31, 2
        // Predicated region
        $region69: #{tpu_custom_call.1} parent=67 // pred_check
          %p548 = pneg %p159
        $region70: #{tpu_custom_call.1} parent=67 // pred_check_branch
          %550 = sbr.rel (%p548) target = $region72
        $region71: #{tpu_custom_call.1} parent=67 // pred_region
          %s551 = sand.u32 %s144, 1
          %s552 = scalar_lea.sflag [#allocation5], %s551
          %s553 = sand.u32 %s144, 1
          %s554 = smul.addr %s553, 8
          %s555 = scalar_lea.vmem [#allocation8], %s554
          %556 = dma.done %s552, 128
        $region72: #{tpu_custom_call.1} parent=67 // pred_fallthru
          _
        // Predicated region
        $region73: #{tpu_custom_call.1} parent=67 // pred_check
          %p557 = pneg %p185
        $region74: #{tpu_custom_call.1} parent=67 // pred_check_branch
          %559 = sbr.rel (%p557) target = $region76
        $region75: #{tpu_custom_call.1} parent=67 // pred_region
          %s560 = sand.u32 %s37, 1
          %s561 = scalar_lea.sflag [#allocation10], %s560
          %s562 = sand.u32 %s170, 1
          %s563 = scalar_lea.vmem [#allocation9], %s562
          %564 = dma.done %s561, 16
        $region76: #{tpu_custom_call.1} parent=67 // pred_fallthru
          _
        // Predicated region
        $region77: #{tpu_custom_call.1} parent=67 // pred_check
          %p565 = pneg %p211
        $region78: #{tpu_custom_call.1} parent=67 // pred_check_branch
          %567 = sbr.rel (%p565) target = $region80
        $region79: #{tpu_custom_call.1} parent=67 // pred_region
          %s568 = sand.u32 %s37, 1
          %s569 = scalar_lea.sflag [#allocation10], %s568
          %s570 = sand.u32 %s196, 1
          %s571 = scalar_lea.vmem [#allocation11], %s570
          %572 = dma.done %s569, 16
        $region80: #{tpu_custom_call.1} parent=67 // pred_fallthru
          _
        // Predicated region
        $region81: #{tpu_custom_call.1} parent=67 // pred_check
          %p573 = pneg %p237
        $region82: #{tpu_custom_call.1} parent=67 // pred_check_branch
          %575 = sbr.rel (%p573) target = $region84
        $region83: #{tpu_custom_call.1} parent=67 // pred_region
          %s576 = sand.u32 %s37, 1
          %s577 = scalar_lea.sflag [#allocation13], %s576
          %s578 = sand.u32 %s222, 1
          %s579 = scalar_lea.vmem [#allocation12], %s578
          %580 = dma.done %s577, 16
        $region84: #{tpu_custom_call.1} parent=67 // pred_fallthru
          _
        // Predicated region
        $region85: #{tpu_custom_call.1} parent=67 // pred_check
          %p581 = pneg %p263
        $region86: #{tpu_custom_call.1} parent=67 // pred_check_branch
          %583 = sbr.rel (%p581) target = $region88
        $region87: #{tpu_custom_call.1} parent=67 // pred_region
          %s584 = sand.u32 %s37, 1
          %s585 = scalar_lea.sflag [#allocation13], %s584
          %s586 = sand.u32 %s248, 1
          %s587 = scalar_lea.vmem [#allocation14], %s586
          %588 = dma.done %s585, 16
        $region88: #{tpu_custom_call.1} parent=67 // pred_fallthru
          _
      $region68: #{tpu_custom_call.1} parent=5 // pred_fallthru
        _
    $region6: #{tpu_custom_call.1} parent=1 // loop_footer
      %s35 = sadd.s32 1, %s31
    $region7: #{tpu_custom_call.1} parent=1 // loop_footer_branch
      %30 = sbr.rel target = $region3
    $region8: #{tpu_custom_call.1} parent=1 // loop_exit
      _
    %589 = vsyncpa [#allocation4], 1
    %s590 = scalar_lea.sflag [#allocation4], 1
    %591 = vsyncpa %s590, 1
    %592 = vsyncpa [#allocation7], 1
    %s593 = scalar_lea.sflag [#allocation7], 1
    %594 = vsyncpa %s593, 1
    %595 = vsyncpa [#allocation5], 1
    %s596 = scalar_lea.sflag [#allocation5], 1
    %597 = vsyncpa %s596, 1
    %598 = vsyncpa [#allocation10], 1
    %s599 = scalar_lea.sflag [#allocation10], 1
    %600 = vsyncpa %s599, 1
    %601 = vsyncpa [#allocation13], 1
    %s602 = scalar_lea.sflag [#allocation13], 1
    %603 = vsyncpa %s602, 1

</llo_original>
